<compile_context>
chip_gen: v5e
topology: v5e:2x2
jax: 0.10.0
libtpu: 0.0.40
codegen_flags: <defaults>
</compile_context>

<pallas_src>
import jax
import jax.numpy as jnp
from jax.experimental import pallas as pl
from jax.experimental.pallas import tpu as pltpu


def _round_up(v, m):
    return ((v + m - 1) // m) * m


def mlp_kernel(xT_ref, w1_ref, b1_ref, w2_ref, b2_ref, o_ref):
    # Layer 1 on the MXU in canonical (H,K)@(K,TB) form: x arrives pre-transposed,
    # so no in-kernel XLU transpose; bf16 operands, f32 accumulation.
    h_t = jnp.dot(w1_ref[...], xT_ref[...],
                  preferred_element_type=jnp.float32)        # (H, TB) f32
    # f32 epilogue (v5e VPU/EUP have no bf16): bias (H,1) broadcasts over lanes; ReLU.
    h_t = jnp.maximum(h_t + b1_ref[...], 0.0)
    # Layer 2 has N=1: VPU multiply + XLU sublane reduce (not a 1-column MXU matmul).
    z = jnp.sum(h_t * w2_ref[...], axis=0, keepdims=True)    # (1, TB), lane-dense
    z = z + b2_ref[0, 0]                                     # scalar bias from SMEM
    o_ref[...] = jax.nn.sigmoid(z).astype(o_ref.dtype)       # unmasked lane-dense store


def neural_net_forward(x, w1, b1, w2, b2, *, block_b=None):
    """sigmoid(relu(x @ w1.T + b1) @ w2.T + b2), PyTorch nn.Linear layouts.

    x: (B, input), w1: (hidden, input), b1: (hidden,), w2: (1, hidden), b2: (1,)
    Returns (B, 1) in x.dtype.  Matmul runs in bf16 (f32 accumulation), so expect
    ~1e-3-level differences vs. a pure-f32 reference.
    """
    B, in_features = x.shape
    H = w1.shape[0]

    # bf16 matmul operands; epilogue params stay f32.
    xT = x.astype(jnp.bfloat16).T                 # (in_features, B): canonical RHS, no kernel transpose
    w1_bf = w1.astype(jnp.bfloat16)               # resident in VMEM as bf16 (half footprint on v7x)
    b1_col = b1.reshape(H, 1).astype(jnp.float32)
    w2_col = w2.reshape(H, 1).astype(jnp.float32)
    b2_s = b2.reshape(1, 1).astype(jnp.float32)   # scalar -> SMEM

    # Batch-tile selection: lane-aligned, large enough to amortize ~0.35us/step
    # grid overhead, and >=2 steps for B > 256 so v7x's two TensorCores both work.
    if block_b is None:
        if B <= 256:
            block_b = B                                           # single full-extent block
        else:
            block_b = min(1024, _round_up(pl.cdiv(B, 2), 256))    # >=2 steps, 256-aligned
    else:
        block_b = min(block_b, B)
        if block_b != B:
            # Enforce the (8,128) rule / unmasked stores: round to a lane multiple.
            block_b = min(_round_up(max(block_b, 128), 128), B)
    grid = (pl.cdiv(B, block_b),)

    # Explicit VMEM budget (scoped defaults are only 16/32/32 MiB on v5e/v6e/v7x):
    # double-buffered x tile + resident params + f32 intermediates + headroom.
    x_tile = _round_up(in_features, 16) * _round_up(block_b, 128) * 2   # bf16
    w1_vm = _round_up(H, 16) * _round_up(in_features, 128) * 2          # bf16
    vec_vm = _round_up(H, 8) * 128 * 4                                  # (H,1) f32, lane-padded
    o_tile = 8 * _round_up(block_b, 128) * 4
    h_tmp = _round_up(H, 8) * _round_up(block_b, 128) * 4               # f32 intermediate
    vmem_bytes = 2 * x_tile + 2 * (w1_vm + 2 * vec_vm) + 2 * o_tile + 3 * h_tmp + (2 << 20)
    vmem_bytes = int(min(max(vmem_bytes, 16 << 20), 64 << 20))          # cap at v7x physical
    # TODO(synk): for very large H*in_features (bf16 w1 > ~24 MiB) add a trailing
    # "arbitrary" K grid axis with an (H, block_b) f32 accumulator and/or
    # pipeline_mode=pl.Buffered(1) on the resident-weight specs (v7x VMEM budget).

    out_t = pl.pallas_call(
        mlp_kernel,
        out_shape=jax.ShapeDtypeStruct((1, B), x.dtype),
        grid=grid,
        in_specs=[
            pl.BlockSpec((in_features, block_b), lambda i: (0, i)),   # x^T: batch-tiled (lanes)
            pl.BlockSpec((H, in_features), lambda i: (0, 0)),         # w1 (bf16): resident
            pl.BlockSpec((H, 1), lambda i: (0, 0)),                   # b1: resident
            pl.BlockSpec((H, 1), lambda i: (0, 0)),                   # w2: resident
            pl.BlockSpec(memory_space=pltpu.MemorySpace.SMEM),        # b2: scalar in SMEM
        ],
        out_specs=pl.BlockSpec((1, block_b), lambda i: (0, i)),       # lane-dense output
        compiler_params=pltpu.CompilerParams(
            dimension_semantics=("parallel",),        # megacore split on v7x
            vmem_limit_bytes=vmem_bytes,
        ),
    )(xT, w1_bf, b1_col, w2_col, b2_s)

    # (1, B) -> (B, 1): identical row-major data, trivial wrapper-side reshape.
    return out_t.reshape(B, 1)


def init_params(key, input_size, hidden_size, dtype=jnp.float32):
    """PyTorch nn.Linear default init: U[-1/sqrt(fan_in), 1/sqrt(fan_in)], native layouts."""
    k1, k2, k3, k4 = jax.random.split(key, 4)
    bound1 = 1.0 / (input_size ** 0.5)
    bound2 = 1.0 / (hidden_size ** 0.5)
    w1 = jax.random.uniform(k1, (hidden_size, input_size), dtype, -bound1, bound1)
    b1 = jax.random.uniform(k2, (hidden_size,), dtype, -bound1, bound1)
    w2 = jax.random.uniform(k3, (1, hidden_size), dtype, -bound2, bound2)
    b2 = jax.random.uniform(k4, (1,), dtype, -bound2, bound2)
    return w1, b1, w2, b2


def _reference(x, w1, b1, w2, b2):
    return jax.nn.sigmoid(jnp.maximum(x @ w1.T + b1, 0.0) @ w2.T + b2)


if __name__ == "__main__":
    key = jax.random.PRNGKey(0)
    kx, kp = jax.random.split(key)

    batch, input_size, hidden_size = 8, 32, 32
    x = jax.random.normal(kx, (batch, input_size), jnp.float32)
    w1, b1, w2, b2 = init_params(kp, input_size, hidden_size)

    # bf16 matmul operands -> compare to the f32 reference with a loosened tolerance.
    TOL = dict(atol=2e-2, rtol=2e-2)

    # 1) Small batch: single full-extent block, grid=(1,).
    out = jax.block_until_ready(neural_net_forward(x, w1, b1, w2, b2))
    assert out.shape == (batch, 1)
    assert jnp.allclose(out, _reference(x, w1, b1, w2, b2), **TOL), "small-batch mismatch"

    # 2) Larger batch, default tiling: block_b=256, grid=(2,), partial final block (384=256+128).
    xb = jax.random.normal(kx, (384, input_size), jnp.float32)
    outb = jax.block_until_ready(neural_net_forward(xb, w1, b1, w2, b2))
    assert outb.shape == (384, 1)
    assert jnp.allclose(outb, _reference(xb, w1, b1, w2, b2), **TOL), "tiled mismatch"

    # 3) Misaligned user-supplied block_b is rounded to a lane multiple (100 -> 128), grid=(3,).
    outc = jax.block_until_ready(neural_net_forward(xb, w1, b1, w2, b2, block_b=100))
    assert jnp.allclose(outc, _reference(xb, w1, b1, w2, b2), **TOL), "rounded-block mismatch"

    print("KERNEL_OK")
</pallas_src>

<mosaic_0001>
module attributes {stable_mosaic.version = 11 : i64} {
  func.func @mlp_kernel(%arg0: i32, %arg1: memref<32x8xbf16, #tpu.memory_space<vmem>>, %arg2: memref<32x32xbf16, #tpu.memory_space<vmem>>, %arg3: memref<32x1xf32, #tpu.memory_space<vmem>>, %arg4: memref<32x1xf32, #tpu.memory_space<vmem>>, %arg5: memref<1x1xf32, #tpu.memory_space<smem>>, %arg6: memref<1x8xf32, #tpu.memory_space<vmem>>) attributes {dimension_semantics = [#tpu.dimension_semantics<parallel>], iteration_bounds = array<i64: 1>, scalar_prefetch = 0 : i64, scratch_operands = 0 : i64, tpu.core_type = #tpu.core_type<tc>, window_params = [{transform_indices = @transform_0, window_bounds = array<i64: 32, 8>}, {pipeline_mode = #tpu.pipeline_mode<synchronous>, transform_indices = @transform_1, window_bounds = array<i64: 32, 32>}, {pipeline_mode = #tpu.pipeline_mode<synchronous>, transform_indices = @transform_2, window_bounds = array<i64: 32, 1>}, {pipeline_mode = #tpu.pipeline_mode<synchronous>, transform_indices = @transform_3, window_bounds = array<i64: 32, 1>}, {transform_indices = @transform_4, window_bounds = array<i64: 1, 1>}, {transform_indices = @transform_5, window_bounds = array<i64: 1, 8>}]} {
    %c0 = arith.constant 0 : index
    %c0_0 = arith.constant 0 : index
    %0 = vector.load %arg2[%c0, %c0_0] : memref<32x32xbf16, #tpu.memory_space<vmem>>, vector<32x32xbf16>
    %c0_1 = arith.constant 0 : index
    %c0_2 = arith.constant 0 : index
    %1 = vector.load %arg1[%c0_1, %c0_2] : memref<32x8xbf16, #tpu.memory_space<vmem>>, vector<32x8xbf16>
    %cst = arith.constant dense<0.000000e+00> : vector<32x8xf32>
    %2 = tpu.matmul %0, %1, %cst {dimension_numbers = #tpu.dot_dimension_numbers<[1], [0], [0], [1], [0, 0, 1, 1], [], []>} : vector<32x32xbf16>, vector<32x8xbf16>, vector<32x8xf32> -> vector<32x8xf32>
    %c0_3 = arith.constant 0 : index
    %c0_4 = arith.constant 0 : index
    %3 = vector.load %arg3[%c0_3, %c0_4] : memref<32x1xf32, #tpu.memory_space<vmem>>, vector<32x1xf32>
    %4 = vector.broadcast %3 : vector<32x1xf32> to vector<32x8xf32>
    %5 = arith.addf %2, %4 : vector<32x8xf32>
    %cst_5 = arith.constant 0.000000e+00 : f32
    %6 = vector.broadcast %cst_5 : f32 to vector<32x8xf32>
    %7 = arith.maximumf %5, %6 : vector<32x8xf32>
    %c0_6 = arith.constant 0 : index
    %c0_7 = arith.constant 0 : index
    %8 = vector.load %arg4[%c0_6, %c0_7] : memref<32x1xf32, #tpu.memory_space<vmem>>, vector<32x1xf32>
    %9 = vector.broadcast %8 : vector<32x1xf32> to vector<32x8xf32>
    %10 = arith.mulf %7, %9 : vector<32x8xf32>
    %cst_8 = arith.constant dense<0.000000e+00> : vector<8xf32>
    %11 = vector.multi_reduction <add>, %10, %cst_8 [0] : vector<32x8xf32> to vector<8xf32>
    %12 = vector.shape_cast %11 : vector<8xf32> to vector<1x8xf32>
    %c0_9 = arith.constant 0 : index
    %c0_10 = arith.constant 0 : index
    %13 = memref.load %arg5[%c0_9, %c0_10] : memref<1x1xf32, #tpu.memory_space<smem>>
    %14 = vector.broadcast %13 : f32 to vector<1x8xf32>
    %15 = arith.addf %12, %14 : vector<1x8xf32>
    %16 = arith.negf %15 : vector<1x8xf32>
    %17 = math.exp %16 : vector<1x8xf32>
    %cst_11 = arith.constant 1.000000e+00 : f32
    %18 = vector.broadcast %cst_11 : f32 to vector<1x8xf32>
    %19 = arith.addf %18, %17 : vector<1x8xf32>
    %20 = arith.divf %18, %19 : vector<1x8xf32>
    %c0_12 = arith.constant 0 : index
    %c0_13 = arith.constant 0 : index
    %21 = vector.load %arg6[%c0_12, %c0_13] : memref<1x8xf32, #tpu.memory_space<vmem>>, vector<1x8xf32>
    tpu.vector_store %arg6[%c0_12, %c0_13], %20 {strides = array<i32>} : memref<1x8xf32, #tpu.memory_space<vmem>>, vector<1x8xf32>,
    return
  }
  func.func @transform_0(%arg0: i32) -> (i32, i32) {
    %c0_i32 = arith.constant 0 : i32
    %c0_i32_0 = arith.constant 0 : i32
    return %c0_i32, %arg0 : i32, i32
  }
  func.func @transform_1(%arg0: i32) -> (i32, i32) {
    %c0_i32 = arith.constant 0 : i32
    %c0_i32_0 = arith.constant 0 : i32
    %c0_i32_1 = arith.constant 0 : i32
    return %c0_i32, %c0_i32_0 : i32, i32
  }
  func.func @transform_2(%arg0: i32) -> (i32, i32) {
    %c0_i32 = arith.constant 0 : i32
    %c0_i32_0 = arith.constant 0 : i32
    %c0_i32_1 = arith.constant 0 : i32
    return %c0_i32, %c0_i32_0 : i32, i32
  }
  func.func @transform_3(%arg0: i32) -> (i32, i32) {
    %c0_i32 = arith.constant 0 : i32
    %c0_i32_0 = arith.constant 0 : i32
    %c0_i32_1 = arith.constant 0 : i32
    return %c0_i32, %c0_i32_0 : i32, i32
  }
  func.func @transform_4(%arg0: i32) -> (i32, i32) {
    %c0_i32 = arith.constant 0 : i32
    %c0_i32_0 = arith.constant 0 : i32
    %c0_i32_1 = arith.constant 0 : i32
    return %c0_i32, %c0_i32_0 : i32, i32
  }
  func.func @transform_5(%arg0: i32) -> (i32, i32) {
    %c0_i32 = arith.constant 0 : i32
    %c0_i32_0 = arith.constant 0 : i32
    return %c0_i32, %arg0 : i32, i32
  }
}

</mosaic_0001>

<llo_original>
// kernel: tpu_custom_call.1
$region0: #{tpu_custom_call.1}
  #allocation0 [shape = 'u32[]', space=smem, size = 0x4, offset = 0x4, fixed_abs, tag = 'smem constant byte address 0x4 - core index']
  #allocation1 [shape = 'u32[72,128]{1,0:T(1,128)}', space=vmem, size = 0x9000, scoped, tag = 'internal scratch']
  #allocation2 [shape = 'f32[1,1]{1,0:T(1,128)S(6)}', space=smem, size = 0x200, scoped, tag = 'scoped memory for tpu_custom_call.1']
  %s0 = inlined_call_operand.vmem [shape: bf16[32,8], index: 0, kind: input, shape index: {}]
  %s1 = inlined_call_operand.vmem [shape: bf16[32,32], index: 1, kind: input, shape index: {}]
  %s2 = inlined_call_operand.vmem [shape: f32[32,1], index: 2, kind: input, shape index: {}]
  %s3 = inlined_call_operand.vmem [shape: f32[32,1], index: 3, kind: input, shape index: {}]
  %s4 = inlined_call_operand.<no memory space> [shape: f32[1,1], index: 4, kind: input, shape index: {}]
  %s5 = inlined_call_operand.hbm [shape: f32[1,8], index: 5, kind: output, shape index: {}]
  %s6 = sld [smem:[#allocation0]]
  $region30: #{tpu_custom_call.1} parent=0
    _
  %s8 = ssub.s32 1, %s6
  %s9 = scalar_select 0, %s8, %s6
  %10 = sst [smem:[#allocation2]] %s4
  $region1: #{tpu_custom_call.1} parent=0
    #allocation3 [shape = 'u8[512]{0}', space=vmem, size = 0x400, scoped, tag = 'output window, operand 0, single buffered']
    #allocation4 [shape = 's32[1]{0}', space=sflag, size = 0x4, scoped, tag = 'scoped memory for tpu_custom_call.1']
    %11 = vsyncpa [#allocation4], 0
    // Predicated region
    $region2: #{tpu_custom_call.1} parent=1 // pred_check
      _
    $region3: #{tpu_custom_call.1} parent=1 // pred_check_branch
      %13 = sbr.rel (0) target = $region5
    $region4: #{tpu_custom_call.1} parent=1 // pred_region
      _
    $region5: #{tpu_custom_call.1} parent=1 // pred_fallthru
      _
    // Predicated region
    $region6: #{tpu_custom_call.1} parent=1 // pred_check
      _
    $region7: #{tpu_custom_call.1} parent=1 // pred_check_branch
      %15 = sbr.rel (0) target = $region9
    $region8: #{tpu_custom_call.1} parent=1 // pred_region
      _
    $region9: #{tpu_custom_call.1} parent=1 // pred_fallthru
      _
    // Predicated region
    $region10: #{tpu_custom_call.1} parent=1 // pred_check
      _
    $region11: #{tpu_custom_call.1} parent=1 // pred_check_branch
      %17 = sbr.rel (0) target = $region13
    $region12: #{tpu_custom_call.1} parent=1 // pred_region
      _
    $region13: #{tpu_custom_call.1} parent=1 // pred_fallthru
      _
    // Predicated region
    $region14: #{tpu_custom_call.1} parent=1 // pred_check
      _
    $region15: #{tpu_custom_call.1} parent=1 // pred_check_branch
      %19 = sbr.rel (0) target = $region17
    $region16: #{tpu_custom_call.1} parent=1 // pred_region
      _
    $region17: #{tpu_custom_call.1} parent=1 // pred_fallthru
      _
    // Predicated region
    $region18: #{tpu_custom_call.1} parent=1 // pred_check
      _
    $region19: #{tpu_custom_call.1} parent=1 // pred_check_branch
      %21 = sbr.rel (0) target = $region21
    $region20: #{tpu_custom_call.1} parent=1 // pred_region
      _
    $region21: #{tpu_custom_call.1} parent=1 // pred_fallthru
      _
    %v23 = vld [vmem:[%s1] sm:$0xf]
    %v24 = vld [vmem:[%s1 + $0x4] sm:$0xf]
    %v25 = vld [vmem:[%s1 + $0x8] sm:$0xf]
    %v26 = vld [vmem:[%s1 + $0xc] sm:$0xf]
    %v27 = vld [vmem:[%s0] sm:$0xf]
    %v28 = vld [vmem:[%s0 + $0x4] sm:$0xf]
    %v29 = vld [vmem:[%s0 + $0x8] sm:$0xf]
    %v30 = vld [vmem:[%s0 + $0xc] sm:$0xf]
    %v31 = vld [vmem:[%s2] sm:$0xff]
    %v32 = vld [vmem:[%s2 + $0x8] sm:$0xff]
    %v33 = vld [vmem:[%s2 + $0x10] sm:$0xff]
    %v34 = vld [vmem:[%s2 + $0x18] sm:$0xff]
    %36 = vset.pattern.permute.xlu0 0
    %37 = vperm.xlu0 %36, %v31
    %v38 = vpop.permute.xlu0 %37
    %41 = vset.pattern.permute.xlu0 0
    %42 = vperm.xlu0 %41, %v32
    %v43 = vpop.permute.xlu0 %42
    %46 = vset.pattern.permute.xlu0 0
    %47 = vperm.xlu0 %46, %v33
    %v48 = vpop.permute.xlu0 %47
    %51 = vset.pattern.permute.xlu0 0
    %52 = vperm.xlu0 %51, %v34
    %v53 = vpop.permute.xlu0 %52
    %v59 = vunpack.c.l.b16 %v23
    %v60 = vunpack.c.l.b16 %v24
    %v61 = vunpack.c.l.b16 %v25
    %v62 = vunpack.c.l.b16 %v26
    %v63 = vpack.c.b16 %v60, %v59
    %v64 = vpack.c.b16 %v62, %v61
    %v69 = vunpack.c.l.b16 %v27
    %v70 = vunpack.c.l.b16 %v28
    %v71 = vunpack.c.l.b16 %v29
    %v72 = vunpack.c.l.b16 %v30
    %v73 = vpack.c.b16 %v70, %v69
    %v74 = vpack.c.b16 %v72, %v71
    %vm77 = vcmask 261120
    %v79 = vsel %vm77, %v63, 0
    %v82 = vsel %vm77, %v64, 0
    %84 = vmatpush.bf16.msra.mxu0 0
    %85 = vmatpush.bf16.msra.mxu0 0
    %86 = vmatpush.bf16.msra.mxu0 0
    %87 = vmatpush.bf16.msra.mxu0 0
    %88 = vmatpush.bf16.msra.mxu0 0
    %89 = vmatpush.bf16.msra.mxu0 0
    %90 = vmatpush.bf16.msra.mxu0 %v74
    %91 = vmatpush.bf16.msra.mxu0 %v73
    %92 = vmatmul.bf16.gmra.mxu0 %v79
    %v93 = vpop.f32.mrf.mxu0
    %v94 = vadd.f32 %v38, %v93
    %v95 = vpop.f32.mrf.mxu0
    %v96 = vadd.f32 %v43, %v95
    %97 = vmatmul.bf16.gmra.mxu0 %v82
    %v98 = vpop.f32.mrf.mxu0
    %v99 = vadd.f32 %v48, %v98
    %v100 = vpop.f32.mrf.mxu0
    %v101 = vadd.f32 %v53, %v100
    %102 = vdwg.mxu0
    %v103 = vmax.f32 %v94, 0.0
    %v104 = vmax.f32 %v96, 0.0
    %v105 = vmax.f32 %v99, 0.0
    %v106 = vmax.f32 %v101, 0.0
    %v107 = vld [vmem:[%s3] sm:$0xff]
    %v108 = vld [vmem:[%s3 + $0x8] sm:$0xff]
    %v109 = vld [vmem:[%s3 + $0x10] sm:$0xff]
    %v110 = vld [vmem:[%s3 + $0x18] sm:$0xff]
    %112 = vset.pattern.permute.xlu0 0
    %113 = vperm.xlu0 %112, %v107
    %v114 = vpop.permute.xlu0 %113
    %117 = vset.pattern.permute.xlu0 0
    %118 = vperm.xlu0 %117, %v108
    %v119 = vpop.permute.xlu0 %118
    %122 = vset.pattern.permute.xlu0 0
    %123 = vperm.xlu0 %122, %v109
    %v124 = vpop.permute.xlu0 %123
    %127 = vset.pattern.permute.xlu0 0
    %128 = vperm.xlu0 %127, %v110
    %v129 = vpop.permute.xlu0 %128
    %v131 = vmul.f32 %v103, %v114
    %v132 = vmul.f32 %v104, %v119
    %v133 = vmul.f32 %v105, %v124
    %v134 = vmul.f32 %v106, %v129
    %vm135 = vcmask 64512
    %v136 = vsel %vm135, %v131, 0.0
    %v137 = vsel %vm135, %v132, 0.0
    %v138 = vadd.f32 %v136, %v137
    %v139 = vsel %vm135, %v133, 0.0
    %v140 = vadd.f32 %v138, %v139
    %v141 = vsel %vm135, %v134, 0.0
    %v142 = vadd.f32 %v140, %v141
    %v143 = vrot.slane %v142, 4
    %v144 = vadd.f32 %v142, %v143
    %v145 = vrot.slane %v144, 2
    %v146 = vadd.f32 %v144, %v145
    %v147 = vrot.slane %v146, 1
    %v148 = vadd.f32 %v146, %v147
    %s149 = sld [smem:[#allocation2]]
    %v150 = vstv %s149
    %v151 = vadd.f32 %v148, %v150
    %v152 = vxor.u32 %v151, 2147483648
    %v153 = vmul.f32 %v152, 1.442695
    %v154 = vpow.pop %v153
    %v155 = vadd.f32 %v154, 1.0
    %v156 = vrcp.pop %v155
    %v157 = vmul.f32 %v155, %v156
    %v158 = vsub.f32 1.0, %v157
    %v159 = vmul.f32 %v156, %v158
    %v160 = vadd.f32 %v156, %v159
    %vm161 = vweird.f32 %v155
    %vm162 = vweird.f32 %v156
    %vm163 = vmor %vm161, %vm162
    %v164 = vsel %vm163, %v156, %v160
    %v165 = vand.u32 2147483647, %v155
    %vm166 = vcmp.eq.f32.partialorder %v165, 8.507059e+37
    %v167 = vand.u32 %v155, 2147483648
    %v168 = vor.u32 1.1754944e-38, %v167
    %v169 = vsel %vm166, %v168, %v164
    %v170 = vmul.f32 1.0, %v169
    %vm171 = vcmask 57344
    %172 = vst.msk [vmem:[#allocation3] sm:$0x1] %vm171, %v170
    // Predicated region
    $region22: #{tpu_custom_call.1} parent=1 // pred_check
      _
    $region23: #{tpu_custom_call.1} parent=1 // pred_check_branch
      %174 = sbr.rel (0) target = $region25
    $region24: #{tpu_custom_call.1} parent=1 // pred_region
      %176 = vsyncadd [#allocation4], 0
      %s178 = sshll.u32 [#allocation3], 4
      %s179 = int_to_ptr.vmem [resolvable:$true] %s178
      %s180 = sshll.u32 %s5, 4
      %s181 = int_to_ptr.hbm [resolvable:$true] %s180
      %183 = dma.vmem_to_hbm [thread:$0]  %s179, 16, %s181, [#allocation4]
    $region25: #{tpu_custom_call.1} parent=1 // pred_fallthru
      _
    // Predicated region
    $region26: #{tpu_custom_call.1} parent=1 // pred_check
      _
    $region27: #{tpu_custom_call.1} parent=1 // pred_check_branch
      %185 = sbr.rel (0) target = $region29
    $region28: #{tpu_custom_call.1} parent=1 // pred_region
      %187 = dma.done [#allocation4], 16
    $region29: #{tpu_custom_call.1} parent=1 // pred_fallthru
      _
    %188 = vsyncpa [#allocation4], 1

</llo_original>
